<compile_context>
chip_gen: v7x
topology: tpu7x:2x2x1
jax: 0.10.0
libtpu: 0.0.40
codegen_flags: <defaults>
</compile_context>

<pallas_src>
import jax
import jax.numpy as jnp
from jax.experimental import pallas as pl
from jax.experimental.pallas import tpu as pltpu


def _trace_line_angle_kernel(bias_ref, x_ref, w_ref, o_ref):
    # bias_ref: (1, 1) scalar in SMEM
    # x_ref:    (B, RT_blk) block in VMEM
    # w_ref:    (1, RT_blk) block in VMEM (broadcast over sublanes)
    # o_ref:    (B, RT_blk) block in VMEM
    b = bias_ref[0, 0]
    o_ref[...] = x_ref[...] * w_ref[...] + b


def _choose_block_rows(nf, row_bytes, target_block_bytes, min_grid_steps):
    """Pick B (multiple of 8) rows per block: big enough to amortize the
    ~0.35us per-grid-step overhead, small enough to leave >= min_grid_steps
    blocks along NF when NF is large enough to supply them."""
    by_bytes = max(8, (target_block_bytes // max(1, row_bytes)) // 8 * 8)
    if nf >= min_grid_steps * 8:
        by_steps = max(8, (((nf + min_grid_steps - 1) // min_grid_steps) // 8) * 8)
        b = min(by_bytes, by_steps)
    else:
        b = by_bytes
    nf_padded8 = ((nf + 7) // 8) * 8
    return max(8, min(b, nf_padded8))


def _choose_lane_block(rt, rows, itemsize, lane_budget_bytes):
    """Full RT if the double-buffered x+out footprint fits the VMEM budget;
    otherwise a multiple-of-128 divisor of RT that does."""
    block_bytes = rows * rt * itemsize
    if 4 * block_bytes <= lane_budget_bytes or rt % 128 != 0:
        return rt
    max_lane = max(128, (lane_budget_bytes // (4 * rows * itemsize)) // 128 * 128)
    cand = min(rt, max_lane)
    while cand >= 128:
        if rt % cand == 0:
            return cand
        cand -= 128
    return 128 if rt % 128 == 0 else rt


def trace_line_angle_2d(x, weight, bias, *, target_block_bytes=None,
                        min_grid_steps=None):
    """x: (N, F, R, T); weight: (R, T); bias: (1, 1). Returns x*weight + bias."""
    N, F, R, T = x.shape
    assert weight.shape == (R, T)
    assert bias.shape == (1, 1)

    NF, RT = N * F, R * T
    itemsize = jnp.dtype(x.dtype).itemsize

    # Generation-aware tuning knobs (fallback is the most conservative chip).
    try:
        vmem_cap = int(pltpu.get_tpu_info().vmem_capacity_bytes)
    except Exception:
        vmem_cap = 64 << 20
    small_vmem = vmem_cap <= (96 << 20)          # v7x-like: 64 MiB/TC, 2 TCs
    if target_block_bytes is None:
        target_block_bytes = 8 << 20
    if min_grid_steps is None:
        min_grid_steps = 8 if small_vmem else 4

    # Lane-dense flattening: one long trailing axis, padded at most once/row.
    x2 = x.reshape(NF, RT)
    w2 = weight.reshape(1, RT)

    row_bytes = RT * itemsize
    B = _choose_block_rows(NF, row_bytes, target_block_bytes, min_grid_steps)

    # Pad NF up to a multiple of B instead of degrading to tiny blocks.
    NFp = ((NF + B - 1) // B) * B
    if NFp != NF:
        x2 = jnp.pad(x2, ((0, NFp - NF), (0, 0)))

    # Budget for the double-buffered x/out blocks: physical VMEM minus headroom
    # minus the weight's own (double-buffered) resident block.
    lane_budget = max(1 << 20, vmem_cap - (16 << 20) - 2 * RT * itemsize)
    RT_blk = _choose_lane_block(RT, B, itemsize, lane_budget)

    grid = (NFp // B, RT // RT_blk)

    block_bytes = B * RT_blk * itemsize
    w_bytes = RT_blk * jnp.dtype(weight.dtype).itemsize
    vmem_limit = int(4 * block_bytes + 2 * w_bytes + (4 << 20))
    vmem_limit = min(vmem_limit, max(16 << 20, vmem_cap - (8 << 20)))

    out = pl.pallas_call(
        _trace_line_angle_kernel,
        out_shape=jax.ShapeDtypeStruct((NFp, RT), x.dtype),
        grid_spec=pltpu.PrefetchScalarGridSpec(
            num_scalar_prefetch=0,
            grid=grid,
            in_specs=[
                pl.BlockSpec(memory_space=pltpu.SMEM),              # bias (1, 1)
                pl.BlockSpec((B, RT_blk), lambda i, j: (i, j)),     # x block
                pl.BlockSpec((1, RT_blk), lambda i, j: (0, j)),     # weight block
            ],
            out_specs=pl.BlockSpec((B, RT_blk), lambda i, j: (i, j)),
        ),
        compiler_params=pltpu.CompilerParams(
            dimension_semantics=("parallel", "parallel"),
            vmem_limit_bytes=vmem_limit),
    )(bias, x2, w2)

    if NFp != NF:
        out = out[:NF]
    return out.reshape(N, F, R, T)


if __name__ == "__main__":
    # Small shapes consistent with the module: N=2 batch, F=4 "feature" maps,
    # R=16 lines, T=128 angles.
    N, F, R, T = 2, 4, 16, 128

    key = jax.random.PRNGKey(0)
    kx, kw, kb = jax.random.split(key, 3)

    x = jax.random.normal(kx, (N, F, R, T), dtype=jnp.float32)
    # Parameters matching nn.Parameter(torch.randn(R, T)) / torch.randn(1, 1).
    weight = jax.random.normal(kw, (R, T), dtype=jnp.float32)
    bias = jax.random.normal(kb, (1, 1), dtype=jnp.float32)

    out = trace_line_angle_2d(x, weight, bias)
    out = jax.block_until_ready(out)

    # Reference check in plain JAX.
    ref = x * weight[None, None, :, :] + bias[0, 0]
    assert out.shape == (N, F, R, T)
    assert jnp.allclose(out, ref, atol=1e-6, rtol=1e-6)

    print("KERNEL_OK")
</pallas_src>

<mosaic_0001>
module attributes {stable_mosaic.version = 11 : i64} {
  func.func @_trace_line_angle_kernel(%arg0: i32, %arg1: i32, %arg2: memref<1x1xf32, #tpu.memory_space<smem>>, %arg3: memref<8x2048xf32, #tpu.memory_space<vmem>>, %arg4: memref<1x2048xf32, #tpu.memory_space<vmem>>, %arg5: memref<8x2048xf32, #tpu.memory_space<vmem>>) attributes {dimension_semantics = [#tpu.dimension_semantics<parallel>, #tpu.dimension_semantics<parallel>], iteration_bounds = array<i64: 1, 1>, scalar_prefetch = 0 : i64, scratch_operands = 0 : i64, tpu.core_type = #tpu.core_type<tc>, window_params = [{transform_indices = @transform_0, window_bounds = array<i64: 1, 1>}, {transform_indices = @transform_1, window_bounds = array<i64: 8, 2048>}, {transform_indices = @transform_2, window_bounds = array<i64: 1, 2048>}, {transform_indices = @transform_3, window_bounds = array<i64: 8, 2048>}]} {
    %c0 = arith.constant 0 : index
    %c0_0 = arith.constant 0 : index
    %0 = memref.load %arg2[%c0, %c0_0] : memref<1x1xf32, #tpu.memory_space<smem>>
    %c0_1 = arith.constant 0 : index
    %c0_2 = arith.constant 0 : index
    %1 = vector.load %arg3[%c0_1, %c0_2] : memref<8x2048xf32, #tpu.memory_space<vmem>>, vector<8x2048xf32>
    %c0_3 = arith.constant 0 : index
    %c0_4 = arith.constant 0 : index
    %2 = vector.load %arg4[%c0_3, %c0_4] : memref<1x2048xf32, #tpu.memory_space<vmem>>, vector<1x2048xf32>
    %3 = vector.broadcast %2 : vector<1x2048xf32> to vector<8x2048xf32>
    %4 = arith.mulf %1, %3 : vector<8x2048xf32>
    %5 = vector.broadcast %0 : f32 to vector<8x2048xf32>
    %6 = arith.addf %4, %5 : vector<8x2048xf32>
    %c0_5 = arith.constant 0 : index
    %c0_6 = arith.constant 0 : index
    %7 = vector.load %arg5[%c0_5, %c0_6] : memref<8x2048xf32, #tpu.memory_space<vmem>>, vector<8x2048xf32>
    tpu.vector_store %arg5[%c0_5, %c0_6], %6 {strides = array<i32>} : memref<8x2048xf32, #tpu.memory_space<vmem>>, vector<8x2048xf32>,
    return
  }
  func.func @transform_0(%arg0: i32, %arg1: i32) -> (i32, i32) {
    %c0_i32 = arith.constant 0 : i32
    %c0_i32_0 = arith.constant 0 : i32
    %c0_i32_1 = arith.constant 0 : i32
    return %c0_i32, %c0_i32_0 : i32, i32
  }
  func.func @transform_1(%arg0: i32, %arg1: i32) -> (i32, i32) {
    %c0_i32 = arith.constant 0 : i32
    return %arg0, %arg1 : i32, i32
  }
  func.func @transform_2(%arg0: i32, %arg1: i32) -> (i32, i32) {
    %c0_i32 = arith.constant 0 : i32
    %c0_i32_0 = arith.constant 0 : i32
    return %c0_i32, %arg1 : i32, i32
  }
  func.func @transform_3(%arg0: i32, %arg1: i32) -> (i32, i32) {
    %c0_i32 = arith.constant 0 : i32
    return %arg0, %arg1 : i32, i32
  }
}

</mosaic_0001>

<llo_original>
// kernel: tpu_custom_call.1
$region0: #{tpu_custom_call.1}
  #allocation0 [shape = 'u32[]', space=smem, size = 0x4, offset = 0x4, fixed_abs, tag = 'smem constant byte address 0x4 - core index']
  #allocation1 [shape = 'u32[144,128]{1,0:T(1,128)}', space=vmem, size = 0x12000, scoped, tag = 'internal scratch']
  #allocation2 [shape = 'f32[1,1]{1,0:T(1,128)S(6)}', space=smem, size = 0x200, scoped, tag = 'scoped memory for tpu_custom_call.1']
  %s0 = inlined_call_operand.<no memory space> [shape: f32[1,1], index: 0, kind: input, shape index: {}]
  %s1 = inlined_call_operand.hbm [shape: f32[8,2048], index: 1, kind: input, shape index: {}]
  %s2 = inlined_call_operand.hbm [shape: f32[1,2048], index: 2, kind: input, shape index: {}]
  %s3 = inlined_call_operand.hbm [shape: f32[8,2048], index: 3, kind: output, shape index: {}]
  %s4 = sld [smem:[#allocation0]]
  $region30: #{tpu_custom_call.1} parent=0
    _
  %s6 = ssub.s32 1, %s4
  %s7 = scalar_select 0, %s6, %s4
  %8 = sst [smem:[#allocation2]] %s0
  $region1: #{tpu_custom_call.1} parent=0
    #allocation3 [shape = 'u8[65536]{0}', space=vmem, size = 0x10000, scoped, tag = 'input window, operand 1, single buffered']
    #allocation4 [shape = 's32[1]{0}', space=sflag, size = 0x4, scoped, tag = 'scoped memory for tpu_custom_call.1']
    #allocation5 [shape = 's32[1]{0}', space=sflag, size = 0x4, scoped, tag = 'scoped memory for tpu_custom_call.1']
    #allocation6 [shape = 'u8[8192]{0}', space=vmem, size = 0x2000, scoped, tag = 'input window, operand 2, single buffered']
    #allocation7 [shape = 's32[1]{0}', space=sflag, size = 0x4, scoped, tag = 'scoped memory for tpu_custom_call.1']
    #allocation8 [shape = 'u8[65536]{0}', space=vmem, size = 0x10000, scoped, tag = 'output window, operand 0, single buffered']
    %9 = vsyncpa [#allocation4], 0
    %10 = vsyncpa [#allocation7], 0
    %11 = vsyncpa [#allocation5], 0
    // Predicated region
    $region2: #{tpu_custom_call.1} parent=1 // pred_check
      _
    $region3: #{tpu_custom_call.1} parent=1 // pred_check_branch
      %13 = sbr.rel (0) target = $region5
    $region4: #{tpu_custom_call.1} parent=1 // pred_region
      _
    $region5: #{tpu_custom_call.1} parent=1 // pred_fallthru
      _
    // Predicated region
    $region6: #{tpu_custom_call.1} parent=1 // pred_check
      _
    $region7: #{tpu_custom_call.1} parent=1 // pred_check_branch
      %15 = sbr.rel (0) target = $region9
    $region8: #{tpu_custom_call.1} parent=1 // pred_region
      %s17 = ssub.s32 2048, 2048
      %18 = vsyncadd [#allocation4], %s17
      %s20 = sshll.u32 [#allocation3], 4
      %s21 = int_to_ptr.vmem [resolvable:$true] %s20
      %23 = dma.hbm_to_vmem [thread:$0]  %s1, 2048, %s21, [#allocation4]
    $region9: #{tpu_custom_call.1} parent=1 // pred_fallthru
      _
    // Predicated region
    $region10: #{tpu_custom_call.1} parent=1 // pred_check
      _
    $region11: #{tpu_custom_call.1} parent=1 // pred_check_branch
      %25 = sbr.rel (0) target = $region13
    $region12: #{tpu_custom_call.1} parent=1 // pred_region
      %s27 = ssub.s32 256, 256
      %28 = vsyncadd [#allocation7], %s27
      %s30 = sshll.u32 [#allocation6], 4
      %s31 = int_to_ptr.vmem [resolvable:$true] %s30
      %33 = dma.hbm_to_vmem [thread:$0]  %s2, 256, %s31, [#allocation7]
    $region13: #{tpu_custom_call.1} parent=1 // pred_fallthru
      _
    // Predicated region
    $region14: #{tpu_custom_call.1} parent=1 // pred_check
      _
    $region15: #{tpu_custom_call.1} parent=1 // pred_check_branch
      %35 = sbr.rel (0) target = $region17
    $region16: #{tpu_custom_call.1} parent=1 // pred_region
      %36 = dma.done [#allocation4], 2048
    $region17: #{tpu_custom_call.1} parent=1 // pred_fallthru
      _
    // Predicated region
    $region18: #{tpu_custom_call.1} parent=1 // pred_check
      _
    $region19: #{tpu_custom_call.1} parent=1 // pred_check_branch
      %38 = sbr.rel (0) target = $region21
    $region20: #{tpu_custom_call.1} parent=1 // pred_region
      %39 = dma.done [#allocation7], 256
    $region21: #{tpu_custom_call.1} parent=1 // pred_fallthru
      _
    %s40 = sld [smem:[#allocation2]]
    %v41 = vld [vmem:[#allocation3] sm:$0xff]
    %v42 = vld [vmem:[#allocation3 + $0x8] sm:$0xff]
    %v43 = vld [vmem:[#allocation3 + $0x10] sm:$0xff]
    %v44 = vld [vmem:[#allocation3 + $0x18] sm:$0xff]
    %v45 = vld [vmem:[#allocation3 + $0x20] sm:$0xff]
    %v46 = vld [vmem:[#allocation3 + $0x28] sm:$0xff]
    %v47 = vld [vmem:[#allocation3 + $0x30] sm:$0xff]
    %v48 = vld [vmem:[#allocation3 + $0x38] sm:$0xff]
    %v49 = vld [vmem:[#allocation3 + $0x40] sm:$0xff]
    %v50 = vld [vmem:[#allocation3 + $0x48] sm:$0xff]
    %v51 = vld [vmem:[#allocation3 + $0x50] sm:$0xff]
    %v52 = vld [vmem:[#allocation3 + $0x58] sm:$0xff]
    %v53 = vld [vmem:[#allocation3 + $0x60] sm:$0xff]
    %v54 = vld [vmem:[#allocation3 + $0x68] sm:$0xff]
    %v55 = vld [vmem:[#allocation3 + $0x70] sm:$0xff]
    %v56 = vld [vmem:[#allocation3 + $0x78] sm:$0xff]
    %v57 = vld [vmem:[#allocation6] sm:$0xff]
    %v58 = vld [vmem:[#allocation6 + $0x8] sm:$0xff]
    %v61 = vlaneseq
    %v62 = vshrl.u32 %v61, 7
    %v63 = vsub.s32 0, %v62
    %v64 = vrot.slane %v57, %v63
    %v65 = vlaneseq
    %v66 = vshrl.u32 %v65, 7
    %v67 = vsub.s32 1, %v66
    %v68 = vrot.slane %v57, %v67
    %v69 = vlaneseq
    %v70 = vshrl.u32 %v69, 7
    %v71 = vsub.s32 2, %v70
    %v72 = vrot.slane %v57, %v71
    %v73 = vlaneseq
    %v74 = vshrl.u32 %v73, 7
    %v75 = vsub.s32 3, %v74
    %v76 = vrot.slane %v57, %v75
    %v77 = vlaneseq
    %v78 = vshrl.u32 %v77, 7
    %v79 = vsub.s32 4, %v78
    %v80 = vrot.slane %v57, %v79
    %v81 = vlaneseq
    %v82 = vshrl.u32 %v81, 7
    %v83 = vsub.s32 5, %v82
    %v84 = vrot.slane %v57, %v83
    %v85 = vlaneseq
    %v86 = vshrl.u32 %v85, 7
    %v87 = vsub.s32 6, %v86
    %v88 = vrot.slane %v57, %v87
    %v89 = vlaneseq
    %v90 = vshrl.u32 %v89, 7
    %v91 = vsub.s32 7, %v90
    %v92 = vrot.slane %v57, %v91
    %v93 = vlaneseq
    %v94 = vshrl.u32 %v93, 7
    %v95 = vsub.s32 0, %v94
    %v96 = vrot.slane %v58, %v95
    %v97 = vlaneseq
    %v98 = vshrl.u32 %v97, 7
    %v99 = vsub.s32 1, %v98
    %v100 = vrot.slane %v58, %v99
    %v101 = vlaneseq
    %v102 = vshrl.u32 %v101, 7
    %v103 = vsub.s32 2, %v102
    %v104 = vrot.slane %v58, %v103
    %v105 = vlaneseq
    %v106 = vshrl.u32 %v105, 7
    %v107 = vsub.s32 3, %v106
    %v108 = vrot.slane %v58, %v107
    %v109 = vlaneseq
    %v110 = vshrl.u32 %v109, 7
    %v111 = vsub.s32 4, %v110
    %v112 = vrot.slane %v58, %v111
    %v113 = vlaneseq
    %v114 = vshrl.u32 %v113, 7
    %v115 = vsub.s32 5, %v114
    %v116 = vrot.slane %v58, %v115
    %v117 = vlaneseq
    %v118 = vshrl.u32 %v117, 7
    %v119 = vsub.s32 6, %v118
    %v120 = vrot.slane %v58, %v119
    %v121 = vlaneseq
    %v122 = vshrl.u32 %v121, 7
    %v123 = vsub.s32 7, %v122
    %v124 = vrot.slane %v58, %v123
    %v141 = vmul.f32 %v41, %v64
    %v142 = vmul.f32 %v42, %v68
    %v143 = vmul.f32 %v43, %v72
    %v144 = vmul.f32 %v44, %v76
    %v145 = vmul.f32 %v45, %v80
    %v146 = vmul.f32 %v46, %v84
    %v147 = vmul.f32 %v47, %v88
    %v148 = vmul.f32 %v48, %v92
    %v149 = vmul.f32 %v49, %v96
    %v150 = vmul.f32 %v50, %v100
    %v151 = vmul.f32 %v51, %v104
    %v152 = vmul.f32 %v52, %v108
    %v153 = vmul.f32 %v53, %v112
    %v154 = vmul.f32 %v54, %v116
    %v155 = vmul.f32 %v55, %v120
    %v156 = vmul.f32 %v56, %v124
    %v157 = vstv %s40
    %v158 = vadd.f32 %v141, %v157
    %v159 = vadd.f32 %v142, %v157
    %v160 = vadd.f32 %v143, %v157
    %v161 = vadd.f32 %v144, %v157
    %v162 = vadd.f32 %v145, %v157
    %v163 = vadd.f32 %v146, %v157
    %v164 = vadd.f32 %v147, %v157
    %v165 = vadd.f32 %v148, %v157
    %v166 = vadd.f32 %v149, %v157
    %v167 = vadd.f32 %v150, %v157
    %v168 = vadd.f32 %v151, %v157
    %v169 = vadd.f32 %v152, %v157
    %v170 = vadd.f32 %v153, %v157
    %v171 = vadd.f32 %v154, %v157
    %v172 = vadd.f32 %v155, %v157
    %v173 = vadd.f32 %v156, %v157
    %174 = vst [vmem:[#allocation8] sm:$0xff] %v158
    %175 = vst [vmem:[#allocation8 + $0x8] sm:$0xff] %v159
    %176 = vst [vmem:[#allocation8 + $0x10] sm:$0xff] %v160
    %177 = vst [vmem:[#allocation8 + $0x18] sm:$0xff] %v161
    %178 = vst [vmem:[#allocation8 + $0x20] sm:$0xff] %v162
    %179 = vst [vmem:[#allocation8 + $0x28] sm:$0xff] %v163
    %180 = vst [vmem:[#allocation8 + $0x30] sm:$0xff] %v164
    %181 = vst [vmem:[#allocation8 + $0x38] sm:$0xff] %v165
    %182 = vst [vmem:[#allocation8 + $0x40] sm:$0xff] %v166
    %183 = vst [vmem:[#allocation8 + $0x48] sm:$0xff] %v167
    %184 = vst [vmem:[#allocation8 + $0x50] sm:$0xff] %v168
    %185 = vst [vmem:[#allocation8 + $0x58] sm:$0xff] %v169
    %186 = vst [vmem:[#allocation8 + $0x60] sm:$0xff] %v170
    %187 = vst [vmem:[#allocation8 + $0x68] sm:$0xff] %v171
    %188 = vst [vmem:[#allocation8 + $0x70] sm:$0xff] %v172
    %189 = vst [vmem:[#allocation8 + $0x78] sm:$0xff] %v173
    // Predicated region
    $region22: #{tpu_custom_call.1} parent=1 // pred_check
      _
    $region23: #{tpu_custom_call.1} parent=1 // pred_check_branch
      %191 = sbr.rel (0) target = $region25
    $region24: #{tpu_custom_call.1} parent=1 // pred_region
      %s193 = ssub.s32 2048, 2048
      %194 = vsyncadd [#allocation5], %s193
      %s196 = sshll.u32 [#allocation8], 4
      %s197 = int_to_ptr.vmem [resolvable:$true] %s196
      %199 = dma.vmem_to_hbm [thread:$0]  %s197, 2048, %s3, [#allocation5]
    $region25: #{tpu_custom_call.1} parent=1 // pred_fallthru
      _
    // Predicated region
    $region26: #{tpu_custom_call.1} parent=1 // pred_check
      _
    $region27: #{tpu_custom_call.1} parent=1 // pred_check_branch
      %201 = sbr.rel (0) target = $region29
    $region28: #{tpu_custom_call.1} parent=1 // pred_region
      %202 = dma.done [#allocation5], 2048
    $region29: #{tpu_custom_call.1} parent=1 // pred_fallthru
      _
    %203 = vsyncpa [#allocation4], 1
    %204 = vsyncpa [#allocation7], 1
    %205 = vsyncpa [#allocation5], 1

</llo_original>
